<compile_context>
chip_gen: v6e
topology: v6e:2x2x1
jax: 0.10.0
libtpu: 0.0.40
codegen_flags: <defaults>
</compile_context>

<pallas_src>
import jax
import jax.numpy as jnp
from jax.experimental import pallas as pl
from jax.experimental.pallas import tpu as pltpu

_LANE = 128


def _round_up(x, m):
    return ((x + m - 1) // m) * m


def _cdiv(a, b):
    return -(-a // b)


def _vmem_budgets():
    """Per-step working-set budget and compiler VMEM limit, per chip gen."""
    try:
        vmem_cap = int(pltpu.get_tpu_info().vmem_capacity_bytes)
    except Exception:  # pragma: no cover - conservative fallback (v7x-safe)
        vmem_cap = 64 * 1024 * 1024
    vmem_limit = min(3 * vmem_cap // 4, 64 * 1024 * 1024)   # 48 MiB v7x, 64 MiB v5e/v6e
    budget = vmem_limit // 2                                  # 24 MiB v7x, 32 MiB v5e/v6e
    return budget, vmem_limit


def _select_tiles(B, C, HW, budget):
    """Pick (tb, n_b_tiles, hw_tile, n_hw_tiles, hw_padded)."""
    hw_pad128 = _round_up(HW, _LANE)

    # Per-lane-column bytes at tb=1: x in+out double-buffered (4*C*4B) plus the
    # double-buffered (C+2)-row selector slab.
    bytes_per_lane = 4 * (4 * C + 2 * (C + 2))
    max_lanes = max(_LANE, (budget // bytes_per_lane) // _LANE * _LANE)

    n_hw = max(1, _cdiv(hw_pad128, max_lanes))
    hw_tile = _round_up(_cdiv(hw_pad128, n_hw), _LANE)   # balanced tiles, pad < 128/tile

    # Batch packing within the remaining budget (no divisor requirement; B is
    # padded below).  Cap so that a single-HW-tile problem still has >= 2 grid
    # steps (v7x megacore + pipeline overlap).
    sel_bytes = 2 * (C + 2) * hw_tile * 4
    per_b = 4 * C * hw_tile * 4
    tb = max(1, min(B, max(0, budget - sel_bytes) // per_b))
    if n_hw == 1 and B >= 2:
        tb = min(tb, max(1, B // 2))
    n_b = _cdiv(B, tb)

    if n_hw == 1 and n_b == 1 and hw_pad128 >= 2 * _LANE:
        n_hw = 2
        hw_tile = _round_up(_cdiv(hw_pad128, 2), _LANE)

    hw_padded = n_hw * hw_tile
    return tb, n_b, hw_tile, n_hw, hw_padded


def _make_kernel(n_ch):
    """FrFBM kernel for static channel count n_ch.

    x_ref:   (tb, C, T)    current batch/spatial tile
    sel_ref: (C+2, T)      rows 0..C-1: per-pixel selected weights,
                           row C: selected bias, row C+1: coverage / n_bands
    o_ref:   (tb, C, T)
    """
    # NOTE: for very large C an MXU dot would beat this unrolled VPU fma
    # chain; for typical small C it avoids MXU push/pop and layout shuffles.
    def kernel(x_ref, sel_ref, o_ref):
        x = x_ref[...]                                    # (tb, C, T)
        sel = sel_ref[...]                                # (C+2, T)

        logit = x[:, 0:1, :] * sel[0:1, :][None]          # (tb, 1, T)
        for c in range(1, n_ch):
            logit = logit + x[:, c:c + 1, :] * sel[c:c + 1, :][None]
        logit = logit + sel[n_ch:n_ch + 1, :][None]       # + selected bias

        # coverage/n_bands is 0 outside every band (and in spatial padding),
        # so uncovered pixels produce exactly 0 — matches the reference.
        factor = jax.nn.sigmoid(logit) * sel[n_ch + 1:n_ch + 2, :][None]
        o_ref[...] = x * factor

    return kernel


def frfbm_forward(x_nchw, conv_w, conv_b, n_bands=4):
    """FrFBM forward.

    x_nchw: (B, C, H, W) float32
    conv_w: (n_bands, C) float32  -- 1x1 conv weights (Conv2d(C, 1, 1))
    conv_b: (n_bands,)   float32  -- 1x1 conv biases
    """
    B, C, H, W = x_nchw.shape
    HW = H * W

    budget, vmem_limit = _vmem_budgets()
    tb, n_b_tiles, hw_tile, n_hw_tiles, hw_padded = _select_tiles(B, C, HW, budget)
    B_padded = n_b_tiles * tb

    # ---- precompute the per-pixel selector slab (band loop hoisted here) ----
    thresholds = jnp.linspace(0.0, 0.5, n_bands + 1).astype(jnp.float32)
    u = jnp.linspace(-0.5, 0.5, H)
    v = jnp.linspace(-0.5, 0.5, W)
    uu, vv = jnp.meshgrid(u, v, indexing="ij")
    norm = jnp.sqrt(uu * uu + vv * vv).astype(jnp.float32).reshape(HW)
    low = thresholds[:-1][:, None]
    high = thresholds[1:][:, None]
    masks = ((low <= norm[None, :]) & (norm[None, :] < high)).astype(jnp.float32)  # (NB,HW)

    w2d = conv_w.astype(jnp.float32)                        # (NB, C)
    b1d = conv_b.astype(jnp.float32)                        # (NB,)
    w_sel = w2d.T @ masks                                   # (C, HW)
    b_sel = b1d @ masks                                     # (HW,)
    cov = jnp.sum(masks, axis=0)                            # (HW,)
    sel = jnp.concatenate(
        [w_sel, b_sel[None, :], (cov * (1.0 / float(n_bands)))[None, :]], axis=0
    )                                                       # (C+2, HW)
    if hw_padded != HW:
        sel = jnp.pad(sel, ((0, 0), (0, hw_padded - HW)))   # pad cov=0 -> out 0

    # ---- pad / flatten x (lane-dense flattened spatial last axis) ----
    x_flat = x_nchw.reshape(B, C, HW).astype(jnp.float32)
    pad_b = B_padded - B
    pad_hw = hw_padded - HW
    if pad_b or pad_hw:
        x_flat = jnp.pad(x_flat, ((0, pad_b), (0, 0), (0, pad_hw)))

    kernel = _make_kernel(C)

    cost = pl.CostEstimate(
        flops=int(B_padded * hw_padded * (3 * C + 4)),
        transcendentals=int(B_padded * hw_padded),
        bytes_accessed=int((2 * B_padded * C + (C + 2)) * hw_padded * 4),
    )

    # Grid: spatial axis OUTERMOST so the selector slab (index (0, hw)) is
    # constant across the inner batch axis and stays resident in VMEM.
    out_flat = pl.pallas_call(
        kernel,
        out_shape=jax.ShapeDtypeStruct((B_padded, C, hw_padded), jnp.float32),
        grid_spec=pltpu.PrefetchScalarGridSpec(
            num_scalar_prefetch=0,
            grid=(n_hw_tiles, n_b_tiles),
            in_specs=[
                pl.BlockSpec((tb, C, hw_tile), lambda hw, bi: (bi, 0, hw)),
                pl.BlockSpec((C + 2, hw_tile), lambda hw, bi: (0, hw)),
            ],
            out_specs=pl.BlockSpec((tb, C, hw_tile), lambda hw, bi: (bi, 0, hw)),
        ),
        compiler_params=pltpu.CompilerParams(
            dimension_semantics=("parallel", "parallel"),
            vmem_limit_bytes=int(vmem_limit),
        ),
        cost_estimate=cost,
    )(x_flat, sel)

    return out_flat[:B, :, :HW].reshape(B, C, H, W)


def _reference(x_nchw, conv_w, conv_b, n_bands=4):
    """Pure-JAX reference mirroring the PyTorch forward."""
    B, C, H, W = x_nchw.shape
    u = jnp.linspace(-0.5, 0.5, H)
    v = jnp.linspace(-0.5, 0.5, W)
    uu, vv = jnp.meshgrid(u, v, indexing="ij")
    norm = jnp.sqrt(uu * uu + vv * vv)
    thresholds = jnp.linspace(0.0, 0.5, n_bands + 1)

    outs = []
    for i in range(n_bands):
        mask = ((thresholds[i] <= norm) & (norm < thresholds[i + 1])
                ).astype(jnp.float32)                      # (H, W)
        y_b = x_nchw * mask[None, None]                    # (B, C, H, W)
        logits = jnp.einsum("bchw,c->bhw", x_nchw, conv_w[i]) + conv_b[i]
        a_b = jax.nn.sigmoid(logits)[:, None]              # (B, 1, H, W)
        outs.append(a_b * y_b)
    return jnp.mean(jnp.stack(outs, axis=0), axis=0)


if __name__ == "__main__":
    B, C, H, W = 2, 4, 16, 16
    n_bands = 4

    key = jax.random.PRNGKey(0)
    kx, kw, kb = jax.random.split(key, 3)
    x = jax.random.normal(kx, (B, C, H, W), dtype=jnp.float32)
    # deterministic synthetic init of the n_bands 1x1 convs (Conv2d(C, 1, 1))
    conv_w = 0.1 * jax.random.normal(kw, (n_bands, C), dtype=jnp.float32)
    conv_b = 0.1 * jax.random.normal(kb, (n_bands,), dtype=jnp.float32)

    out = frfbm_forward(x, conv_w, conv_b, n_bands=n_bands)
    out = jax.block_until_ready(out)

    ref = _reference(x, conv_w, conv_b, n_bands=n_bands)
    assert out.shape == (B, C, H, W)
    assert jnp.allclose(out, ref, atol=1e-5, rtol=1e-5)

    print("KERNEL_OK")
</pallas_src>

<mosaic_0001>
module attributes {stable_mosaic.version = 11 : i64} {
  func.func @kernel(%arg0: i32, %arg1: i32, %arg2: memref<1x4x256xf32, #tpu.memory_space<vmem>>, %arg3: memref<6x256xf32, #tpu.memory_space<vmem>>, %arg4: memref<1x4x256xf32, #tpu.memory_space<vmem>>) attributes {dimension_semantics = [#tpu.dimension_semantics<parallel>, #tpu.dimension_semantics<parallel>], iteration_bounds = array<i64: 1, 2>, scalar_prefetch = 0 : i64, scratch_operands = 0 : i64, tpu.core_type = #tpu.core_type<tc>, window_params = [{transform_indices = @transform_0, window_bounds = array<i64: 1, 4, 256>}, {transform_indices = @transform_1, window_bounds = array<i64: 6, 256>}, {transform_indices = @transform_2, window_bounds = array<i64: 1, 4, 256>}]} {
    %c0 = arith.constant 0 : index
    %c0_0 = arith.constant 0 : index
    %c0_1 = arith.constant 0 : index
    %0 = vector.load %arg2[%c0, %c0_0, %c0_1] : memref<1x4x256xf32, #tpu.memory_space<vmem>>, vector<1x4x256xf32>
    %c0_2 = arith.constant 0 : index
    %c0_3 = arith.constant 0 : index
    %1 = vector.load %arg3[%c0_2, %c0_3] : memref<6x256xf32, #tpu.memory_space<vmem>>, vector<6x256xf32>
    %2 = vector.extract_strided_slice %0 {offsets = [0, 0, 0], sizes = [1, 1, 256], strides = [1, 1, 1]} : vector<1x4x256xf32> to vector<1x1x256xf32>
    %3 = vector.extract_strided_slice %1 {offsets = [0, 0], sizes = [1, 256], strides = [1, 1]} : vector<6x256xf32> to vector<1x256xf32>
    %4 = vector.shape_cast %3 : vector<1x256xf32> to vector<1x1x256xf32>
    %5 = arith.mulf %2, %4 : vector<1x1x256xf32>
    %6 = vector.extract_strided_slice %0 {offsets = [0, 1, 0], sizes = [1, 1, 256], strides = [1, 1, 1]} : vector<1x4x256xf32> to vector<1x1x256xf32>
    %7 = vector.extract_strided_slice %1 {offsets = [1, 0], sizes = [1, 256], strides = [1, 1]} : vector<6x256xf32> to vector<1x256xf32>
    %8 = vector.shape_cast %7 : vector<1x256xf32> to vector<1x1x256xf32>
    %9 = arith.mulf %6, %8 : vector<1x1x256xf32>
    %10 = arith.addf %5, %9 : vector<1x1x256xf32>
    %11 = vector.extract_strided_slice %0 {offsets = [0, 2, 0], sizes = [1, 1, 256], strides = [1, 1, 1]} : vector<1x4x256xf32> to vector<1x1x256xf32>
    %12 = vector.extract_strided_slice %1 {offsets = [2, 0], sizes = [1, 256], strides = [1, 1]} : vector<6x256xf32> to vector<1x256xf32>
    %13 = vector.shape_cast %12 : vector<1x256xf32> to vector<1x1x256xf32>
    %14 = arith.mulf %11, %13 : vector<1x1x256xf32>
    %15 = arith.addf %10, %14 : vector<1x1x256xf32>
    %16 = vector.extract_strided_slice %0 {offsets = [0, 3, 0], sizes = [1, 1, 256], strides = [1, 1, 1]} : vector<1x4x256xf32> to vector<1x1x256xf32>
    %17 = vector.extract_strided_slice %1 {offsets = [3, 0], sizes = [1, 256], strides = [1, 1]} : vector<6x256xf32> to vector<1x256xf32>
    %18 = vector.shape_cast %17 : vector<1x256xf32> to vector<1x1x256xf32>
    %19 = arith.mulf %16, %18 : vector<1x1x256xf32>
    %20 = arith.addf %15, %19 : vector<1x1x256xf32>
    %21 = vector.extract_strided_slice %1 {offsets = [4, 0], sizes = [1, 256], strides = [1, 1]} : vector<6x256xf32> to vector<1x256xf32>
    %22 = vector.shape_cast %21 : vector<1x256xf32> to vector<1x1x256xf32>
    %23 = arith.addf %20, %22 : vector<1x1x256xf32>
    %24 = arith.negf %23 : vector<1x1x256xf32>
    %25 = math.exp %24 : vector<1x1x256xf32>
    %cst = arith.constant 1.000000e+00 : f32
    %26 = vector.broadcast %cst : f32 to vector<1x1x256xf32>
    %27 = arith.addf %26, %25 : vector<1x1x256xf32>
    %28 = arith.divf %26, %27 : vector<1x1x256xf32>
    %29 = vector.extract_strided_slice %1 {offsets = [5, 0], sizes = [1, 256], strides = [1, 1]} : vector<6x256xf32> to vector<1x256xf32>
    %30 = vector.shape_cast %29 : vector<1x256xf32> to vector<1x1x256xf32>
    %31 = arith.mulf %28, %30 : vector<1x1x256xf32>
    %32 = vector.broadcast %31 : vector<1x1x256xf32> to vector<1x4x256xf32>
    %33 = arith.mulf %0, %32 : vector<1x4x256xf32>
    %c0_4 = arith.constant 0 : index
    %c0_5 = arith.constant 0 : index
    %c0_6 = arith.constant 0 : index
    %34 = vector.load %arg4[%c0_4, %c0_5, %c0_6] : memref<1x4x256xf32, #tpu.memory_space<vmem>>, vector<1x4x256xf32>
    tpu.vector_store %arg4[%c0_4, %c0_5, %c0_6], %33 {strides = array<i32>} : memref<1x4x256xf32, #tpu.memory_space<vmem>>, vector<1x4x256xf32>,
    return
  }
  func.func @transform_0(%arg0: i32, %arg1: i32) -> (i32, i32, i32) {
    %c0_i32 = arith.constant 0 : i32
    %c0_i32_0 = arith.constant 0 : i32
    return %arg1, %c0_i32, %arg0 : i32, i32, i32
  }
  func.func @transform_1(%arg0: i32, %arg1: i32) -> (i32, i32) {
    %c0_i32 = arith.constant 0 : i32
    %c0_i32_0 = arith.constant 0 : i32
    return %c0_i32, %arg0 : i32, i32
  }
  func.func @transform_2(%arg0: i32, %arg1: i32) -> (i32, i32, i32) {
    %c0_i32 = arith.constant 0 : i32
    %c0_i32_0 = arith.constant 0 : i32
    return %arg1, %c0_i32, %arg0 : i32, i32, i32
  }
}

</mosaic_0001>

<llo_original>
// kernel: tpu_custom_call.1
$region0: #{tpu_custom_call.1}
  #allocation0 [shape = 'u32[]', space=smem, size = 0x4, offset = 0x4, fixed_abs, tag = 'smem constant byte address 0x4 - core index']
  #allocation1 [shape = 'u32[144,128]{1,0:T(1,128)}', space=vmem, size = 0x12000, scoped, tag = 'internal scratch']
  %s0 = inlined_call_operand.hbm [shape: f32[2,4,256], index: 0, kind: input, shape index: {}]
  %s1 = inlined_call_operand.hbm [shape: f32[6,256], index: 1, kind: input, shape index: {}]
  %s2 = inlined_call_operand.hbm [shape: f32[2,4,256], index: 2, kind: output, shape index: {}]
  %s3 = sld [smem:[#allocation0]]
  $region49: #{tpu_custom_call.1} parent=0
    _
  %s5 = ssub.s32 1, %s3
  %s6 = scalar_select 0, %s5, %s3
  $region1: #{tpu_custom_call.1} parent=0
    #allocation2 [shape = 'u8[8192]{0}', space=vmem, size = 0x2000, scoped, tag = 'input window, operand 0']
    #allocation3 [shape = 's32[2]{0}', space=sflag, size = 0x8, scoped, tag = 'scoped memory for tpu_custom_call.1']
    #allocation4 [shape = 's32[2]{0}', space=sflag, size = 0x8, scoped, tag = 'scoped memory for tpu_custom_call.1']
    #allocation5 [shape = 'u8[8192]{0}', space=vmem, size = 0x2000, scoped, tag = 'input window, operand 1, single buffered']
    #allocation6 [shape = 's32[1]{0}', space=sflag, size = 0x4, scoped, tag = 'scoped memory for tpu_custom_call.1']
    #allocation7 [shape = 'u8[8192]{0}', space=vmem, size = 0x2000, scoped, tag = 'output window, operand 0']
    %7 = vsyncpa [#allocation3], 0
    %s8 = scalar_lea.sflag [#allocation3], 1
    %9 = vsyncpa %s8, 0
    %10 = vsyncpa [#allocation6], 0
    %11 = vsyncpa [#allocation4], 0
    %s12 = scalar_lea.sflag [#allocation4], 1
    %13 = vsyncpa %s12, 0
    loop: start=0, step=1, limit=4
    $region2: #{tpu_custom_call.1} parent=1 // loop_pre_header
      _
    $region3: #{tpu_custom_call.1} parent=1 // loop_header
      %s15 = sphi 0, %s19
      %p16 = scmp.ge.s32.totalorder %s15, 4
      %s22 = sphi 0, %s34
      %s23 = sphi 0, %s30
      %s24 = sphi 0, %s22
      %s25 = sphi 0, %s23
      %s26 = sphi 0, %s24
      %s27 = sphi 0, %s25
      %s39 = sphi 0, %s41
      %s42 = sphi 0, %s39
      %s43 = sphi 0, %s42
      %s59 = sphi 0, %s43
      %s65 = sphi 0, %s67
      %s68 = sphi 0, %s65
      %s69 = sphi 0, %s68
      %s85 = sphi 0, %s69
      %s93 = sphi 0, %s95
      %s96 = sphi 0, %s93
      %s97 = sphi 0, %s96
      %s113 = sphi 0, %s97
    $region4: #{tpu_custom_call.1} parent=1 // loop_header_branch
      %18 = sbr.rel (%p16) target = $region8
    $region5: #{tpu_custom_call.1} parent=1 // loop_body
      %s20 = ssub.s32 %s15, 1
      %s21 = ssub.s32 %s15, 2
      %s28 = sadd.s32 1, %s23
      %p29 = scmp.ge.s32.totalorder %s28, 2
      %s30 = scalar_select %p29, 0, %s28
      %s31 = sadd.s32 1, %s22
      %s32 = scalar_select %p29, %s31, %s22
      %p33 = scmp.ge.s32.totalorder %s32, 1
      %s34 = scalar_select %p33, 0, %s32
      %s35 = ssub.s32 %s23, %s30
      %s36 = ssub.s32 %s22, %s34
      %s37 = sor.u32 %s35, %s36
      %p38 = scmp.eq.s32.totalorder %s37, 0
      %s40 = sadd.s32 %s39, 1
      %s41 = scalar_select %p38, %s39, %s40
      %p44 = pneg %p38
      %p45 = scmp.eq.s32.totalorder %s15, 1
      %p46 = por %p44, %p45
      %p47 = scmp.ne.s32.totalorder %s39, %s42
      %p48 = scmp.eq.s32.totalorder %s15, 0
      %p49 = por %p47, %p48
      %p50 = scmp.ne.s32.totalorder %s39, %s42
      %p51 = scmp.eq.s32.totalorder %s20, 1
      %p52 = por %p50, %p51
      %p53 = scmp.ne.s32.totalorder %s42, %s43
      %p54 = scmp.eq.s32.totalorder %s20, 0
      %p55 = por %p53, %p54
      %p56 = scmp.ne.s32.totalorder %s42, %s43
      %p57 = scmp.eq.s32.totalorder %s21, 1
      %p58 = por %p56, %p57
      %p60 = scmp.ne.s32.totalorder %s43, %s59
      %p61 = scmp.eq.s32.totalorder %s21, 0
      %p62 = por %p60, %p61
      %s63 = ssub.s32 %s22, %s34
      %p64 = scmp.eq.s32.totalorder %s63, 0
      %s66 = sadd.s32 %s65, 1
      %s67 = scalar_select %p64, %s65, %s66
      %p70 = pneg %p64
      %p71 = scmp.eq.s32.totalorder %s15, 1
      %p72 = por %p70, %p71
      %p73 = scmp.ne.s32.totalorder %s65, %s68
      %p74 = scmp.eq.s32.totalorder %s15, 0
      %p75 = por %p73, %p74
      %p76 = scmp.ne.s32.totalorder %s65, %s68
      %p77 = scmp.eq.s32.totalorder %s20, 1
      %p78 = por %p76, %p77
      %p79 = scmp.ne.s32.totalorder %s68, %s69
      %p80 = scmp.eq.s32.totalorder %s20, 0
      %p81 = por %p79, %p80
      %p82 = scmp.ne.s32.totalorder %s68, %s69
      %p83 = scmp.eq.s32.totalorder %s21, 1
      %p84 = por %p82, %p83
      %p86 = scmp.ne.s32.totalorder %s69, %s85
      %p87 = scmp.eq.s32.totalorder %s21, 0
      %p88 = por %p86, %p87
      %s89 = ssub.s32 %s23, %s30
      %s90 = ssub.s32 %s22, %s34
      %s91 = sor.u32 %s89, %s90
      %p92 = scmp.eq.s32.totalorder %s91, 0
      %s94 = sadd.s32 %s93, 1
      %s95 = scalar_select %p92, %s93, %s94
      %p98 = pneg %p92
      %p99 = scmp.eq.s32.totalorder %s15, 1
      %p100 = por %p98, %p99
      %p101 = scmp.ne.s32.totalorder %s93, %s96
      %p102 = scmp.eq.s32.totalorder %s15, 0
      %p103 = por %p101, %p102
      %p104 = scmp.ne.s32.totalorder %s93, %s96
      %p105 = scmp.eq.s32.totalorder %s20, 1
      %p106 = por %p104, %p105
      %p107 = scmp.ne.s32.totalorder %s96, %s97
      %p108 = scmp.eq.s32.totalorder %s20, 0
      %p109 = por %p107, %p108
      %p110 = scmp.ne.s32.totalorder %s96, %s97
      %p111 = scmp.eq.s32.totalorder %s21, 1
      %p112 = por %p110, %p111
      %p114 = scmp.ne.s32.totalorder %s97, %s113
      %p115 = scmp.eq.s32.totalorder %s21, 0
      %p116 = por %p114, %p115
      %p117 = scmp.le.s32.totalorder 1, %s15
      %p118 = scmp.lt.s32.totalorder %s15, 3
      %p119 = pnand %p117, %p118
      %p120 = pneg %p119
      // Predicated region
      $region9: #{tpu_custom_call.1} parent=5 // pred_check
        _
      $region10: #{tpu_custom_call.1} parent=5 // pred_check_branch
        %122 = sbr.rel (%p119) target = $region12
      $region11: #{tpu_custom_call.1} parent=5 // pred_region
        %s123 = ssub.s32 %s15, 1
        // Predicated region
        $region13: #{tpu_custom_call.1} parent=11 // pred_check
          %p124 = pneg %p81
        $region14: #{tpu_custom_call.1} parent=11 // pred_check_branch
          %126 = sbr.rel (%p124) target = $region16
        $region15: #{tpu_custom_call.1} parent=11 // pred_region
          %s127 = smul.u32 2, %s24
          %s129 = ssub.s32 256, 256
          %130 = vsyncadd [#allocation6], %s129
          %s131 = smul.addr %s127, 128
          %s132 = scalar_lea.hbm %s1, %s131
          %s134 = sshll.u32 [#allocation5], 4
          %s135 = int_to_ptr.vmem [resolvable:$true] %s134
          %137 = dma.hbm_to_vmem [thread:$0]  %s132, 256, %s135, [#allocation6]
        $region16: #{tpu_custom_call.1} parent=11 // pred_fallthru
          _
      $region12: #{tpu_custom_call.1} parent=5 // pred_fallthru
        _
      %p138 = scmp.lt.s32.totalorder %s15, 2
      // Predicated region
      $region17: #{tpu_custom_call.1} parent=5 // pred_check
        %p139 = pneg %p138
      $region18: #{tpu_custom_call.1} parent=5 // pred_check_branch
        %141 = sbr.rel (%p139) target = $region20
      $region19: #{tpu_custom_call.1} parent=5 // pred_region
        // Predicated region
        $region21: #{tpu_custom_call.1} parent=19 // pred_check
          %p142 = pneg %p49
        $region22: #{tpu_custom_call.1} parent=19 // pred_check_branch
          %144 = sbr.rel (%p142) target = $region24
        $region23: #{tpu_custom_call.1} parent=19 // pred_region
          %s145 = sand.u32 %s39, 1
          %s146 = scalar_lea.sflag [#allocation3], %s145
          %s147 = sand.u32 %s39, 1
          %s148 = smul.addr %s147, 8
          %s149 = scalar_lea.vmem [#allocation2], %s148
          %s150 = smul.u32 2, %s22
          %s152 = ssub.s32 128, 128
          %153 = vsyncadd %s146, %s152
          %s154 = smul.addr %s23, 2
          %s155 = sadd.s32 %s150, %s154
          %s156 = smul.addr %s155, 64
          %s157 = scalar_lea.hbm %s0, %s156
          %s159 = sshll.u32 %s149, 4
          %s160 = int_to_ptr.vmem [resolvable:$true] %s159
          %162 = dma.hbm_to_vmem [thread:$0]  %s157, 128, %s160, %s146
        $region24: #{tpu_custom_call.1} parent=19 // pred_fallthru
          _
      $region20: #{tpu_custom_call.1} parent=5 // pred_fallthru
        _
      %p163 = scmp.le.s32.totalorder 1, %s15
      %p164 = scmp.lt.s32.totalorder %s15, 3
      %p165 = pnand %p163, %p164
      %p166 = pneg %p165
      // Predicated region
      $region25: #{tpu_custom_call.1} parent=5 // pred_check
        _
      $region26: #{tpu_custom_call.1} parent=5 // pred_check_branch
        %168 = sbr.rel (%p165) target = $region28
      $region27: #{tpu_custom_call.1} parent=5 // pred_region
        %s169 = ssub.s32 %s15, 1
        %s170 = sand.u32 %s42, 1
        %s171 = scalar_lea.sflag [#allocation3], %s170
        %s172 = sand.u32 %s42, 1
        %s173 = smul.addr %s172, 8
        %s174 = scalar_lea.vmem [#allocation2], %s173
        // Predicated region
        $region29: #{tpu_custom_call.1} parent=27 // pred_check
          %p175 = pneg %p55
        $region30: #{tpu_custom_call.1} parent=27 // pred_check_branch
          %177 = sbr.rel (%p175) target = $region32
        $region31: #{tpu_custom_call.1} parent=27 // pred_region
          %178 = dma.done %s171, 128
        $region32: #{tpu_custom_call.1} parent=27 // pred_fallthru
          _
        // Predicated region
        $region33: #{tpu_custom_call.1} parent=27 // pred_check
          %p179 = pneg %p81
        $region34: #{tpu_custom_call.1} parent=27 // pred_check_branch
          %181 = sbr.rel (%p179) target = $region36
        $region35: #{tpu_custom_call.1} parent=27 // pred_region
          %182 = dma.done [#allocation6], 256
        $region36: #{tpu_custom_call.1} parent=27 // pred_fallthru
          _
        %s183 = sand.u32 %s42, 1
        %s184 = scalar_lea.sflag [#allocation3], %s183
        %s185 = sand.u32 %s42, 1
        %s186 = smul.addr %s185, 8
        %s187 = scalar_lea.vmem [#allocation2], %s186
        %p188 = pneg %p55
        %p189 = pneg %p52
        %p190 = pneg %p81
        %p191 = pneg %p78
        %p192 = pneg %p109
        %p193 = pneg %p106
        %s194 = sand.u32 %s96, 1
        %s195 = scalar_lea.sflag [#allocation4], %s194
        %s196 = sand.u32 %s96, 1
        %s197 = smul.addr %s196, 8
        %s198 = scalar_lea.vmem [#allocation7], %s197
        %s199 = smul.u32 2, %s24
        %s200 = smul.u32 2, %s24
        %s201 = smul.u32 2, %s24
        %v202 = vld [vmem:[%s174] sm:$0xff]
        %v203 = vld [vmem:[#allocation5] sm:$0x3f]
        %v204 = vld [vmem:[#allocation5 + $0x8] sm:$0x3f]
        %v207 = vcombine.low %v203, %v204
        %v209 = vmul.f32 %v202, %v207
        %v211 = vrot.slane %v209, 5
        %v212 = vrot.slane %v211, 4
        %v214 = vadd.f32 %v209, %v212
        %v215 = vrot.slane %v209, 6
        %v216 = vrot.slane %v215, 4
        %v218 = vadd.f32 %v214, %v216
        %v219 = vrot.slane %v209, 7
        %v220 = vrot.slane %v219, 4
        %v222 = vadd.f32 %v218, %v220
        %v223 = vcombine.high %v203, %v204
        %v225 = vadd.f32 %v222, %v223
        %v226 = vxor.u32 %v225, 2147483648
        %v227 = vmul.f32 %v226, 1.442695
        %v228 = vpow.pop %v227
        %v229 = vadd.f32 %v228, 1.0
        %v230 = vrcp.pop %v229
        %v231 = vmul.f32 1.0, %v230
        %v232 = vrot.slane %v223, 5
        %v233 = vrot.slane %v232, 4
        %v235 = vmul.f32 %v231, %v233
        %v237 = vlaneseq
        %v238 = vshrl.u32 %v237, 7
        %v239 = vsub.s32 0, %v238
        %v240 = vrot.slane %v235, %v239
        %v241 = vlaneseq
        %v242 = vshrl.u32 %v241, 7
        %v243 = vsub.s32 4, %v242
        %v244 = vrot.slane %v235, %v243
        %v247 = vlaneseq
        %v248 = vshrl.u32 %v247, 7
        %v249 = vsub.s32 0, %v248
        %v250 = vrot.slane %v240, %v249
        %v251 = vlaneseq
        %v252 = vshrl.u32 %v251, 7
        %v253 = vsub.s32 0, %v252
        %v254 = vrot.slane %v244, %v253
        %v257 = vcombine.low %v250, %v254
        %v259 = vmul.f32 %v202, %v257
        %260 = vst [vmem:[%s198] sm:$0xff] %v259
        %s261 = sand.u32 %s96, 1
        %s262 = scalar_lea.sflag [#allocation4], %s261
        %s263 = sand.u32 %s96, 1
        %s264 = smul.addr %s263, 8
        %s265 = scalar_lea.vmem [#allocation7], %s264
        // Predicated region
        $region37: #{tpu_custom_call.1} parent=27 // pred_check
          %p266 = pneg %p106
        $region38: #{tpu_custom_call.1} parent=27 // pred_check_branch
          %268 = sbr.rel (%p266) target = $region40
        $region39: #{tpu_custom_call.1} parent=27 // pred_region
          %s269 = smul.u32 2, %s24
          %s271 = ssub.s32 128, 128
          %272 = vsyncadd %s262, %s271
          %s273 = smul.addr %s25, 2
          %s274 = sadd.s32 %s269, %s273
          %s275 = smul.addr %s274, 64
          %s276 = scalar_lea.hbm %s2, %s275
          %s278 = sshll.u32 %s265, 4
          %s279 = int_to_ptr.vmem [resolvable:$true] %s278
          %281 = dma.vmem_to_hbm [thread:$0]  %s279, 128, %s276, %s262
        $region40: #{tpu_custom_call.1} parent=27 // pred_fallthru
          _
      $region28: #{tpu_custom_call.1} parent=5 // pred_fallthru
        _
      %p282 = scmp.le.s32.totalorder 2, %s15
      // Predicated region
      $region41: #{tpu_custom_call.1} parent=5 // pred_check
        %p283 = pneg %p282
      $region42: #{tpu_custom_call.1} parent=5 // pred_check_branch
        %285 = sbr.rel (%p283) target = $region44
      $region43: #{tpu_custom_call.1} parent=5 // pred_region
        %s286 = ssub.s32 %s15, 2
        // Predicated region
        $region45: #{tpu_custom_call.1} parent=43 // pred_check
          %p287 = pneg %p112
        $region46: #{tpu_custom_call.1} parent=43 // pred_check_branch
          %289 = sbr.rel (%p287) target = $region48
        $region47: #{tpu_custom_call.1} parent=43 // pred_region
          %s290 = sand.u32 %s97, 1
          %s291 = scalar_lea.sflag [#allocation4], %s290
          %s292 = sand.u32 %s97, 1
          %s293 = smul.addr %s292, 8
          %s294 = scalar_lea.vmem [#allocation7], %s293
          %295 = dma.done %s291, 128
        $region48: #{tpu_custom_call.1} parent=43 // pred_fallthru
          _
      $region44: #{tpu_custom_call.1} parent=5 // pred_fallthru
        _
    $region6: #{tpu_custom_call.1} parent=1 // loop_footer
      %s19 = sadd.s32 1, %s15
    $region7: #{tpu_custom_call.1} parent=1 // loop_footer_branch
      %14 = sbr.rel target = $region3
    $region8: #{tpu_custom_call.1} parent=1 // loop_exit
      _
    %296 = vsyncpa [#allocation3], 1
    %s297 = scalar_lea.sflag [#allocation3], 1
    %298 = vsyncpa %s297, 1
    %299 = vsyncpa [#allocation6], 1
    %300 = vsyncpa [#allocation4], 1
    %s301 = scalar_lea.sflag [#allocation4], 1
    %302 = vsyncpa %s301, 1

</llo_original>
